<compile_context>
chip_gen: v7x
topology: tpu7x:2x2x1
jax: 0.10.0
libtpu: 0.0.40
codegen_flags: <defaults>
</compile_context>

<pallas_src>
import functools

import jax
import jax.numpy as jnp
from jax.experimental import pallas as pl
from jax.experimental.pallas import tpu as pltpu


def _avg_pool_kernel(x_ref, o_ref, *, seq_len, tile_l):
    """One grid step: accumulate a (tile_l, H) slab of one batch element."""
    li = pl.program_id(1)

    @pl.when(li == 0)
    def _():
        o_ref[...] = jnp.zeros_like(o_ref)

    x = x_ref[0].astype(jnp.float32)                                 # (tile_l, H)

    # Mask rows past seq_len only when the last tile is partial (static check).
    if seq_len % tile_l != 0:
        row = jax.lax.broadcasted_iota(jnp.int32, (tile_l, 1), 0) + li * tile_l
        x = jnp.where(row < seq_len, x, 0.0)

    # Output block index is constant along the L axis -> o_ref stays resident
    # in VMEM across the reduction; accumulate straight into it (f32).
    o_ref[0] += jnp.sum(x, axis=0, keepdims=True)                    # (1, H)

    @pl.when(li == pl.num_programs(1) - 1)
    def _():
        o_ref[...] = o_ref[...] * (1.0 / seq_len)                    # mean


def average_pool(hidden_states, *, tile_l=512):
    """hidden_states: (N, L, H) -> (N, 1, H), mean over the sequence dim.

    Equivalent to nn.AdaptiveAvgPool2d((1, H)) applied to (N, L, H).
    """
    N, L, H = hidden_states.shape
    tl = min(tile_l, L)
    num_l = pl.cdiv(L, tl)

    kernel = functools.partial(_avg_pool_kernel, seq_len=L, tile_l=tl)

    cost = pl.CostEstimate(
        flops=N * L * H,                       # one add per input element
        transcendentals=0,
        bytes_accessed=hidden_states.size * hidden_states.dtype.itemsize
        + N * H * 4,
    )

    return pl.pallas_call(
        kernel,
        out_shape=jax.ShapeDtypeStruct((N, 1, H), jnp.float32),
        grid_spec=pl.GridSpec(
            grid=(N, num_l),
            in_specs=[pl.BlockSpec((1, tl, H), lambda b, l: (b, l, 0))],
            out_specs=pl.BlockSpec((1, 1, H), lambda b, l: (b, 0, 0)),
        ),
        compiler_params=pltpu.CompilerParams(
            dimension_semantics=("parallel", "arbitrary")),
        cost_estimate=cost,
    )(hidden_states)


def _reference(hidden_states):
    """Pure-JAX reference for AdaptiveAvgPool2d((1, H)) on (N, L, H)."""
    return jnp.mean(hidden_states.astype(jnp.float32), axis=1, keepdims=True)


if __name__ == "__main__":
    # Small shapes consistent with the module: batch=2, seq=128, hidden=768
    # (the 768 is hardcoded by nn.AdaptiveAvgPool2d((1, 768)) in the module).
    N, L, H = 2, 128, 768

    key = jax.random.PRNGKey(0)
    hidden_states = jax.random.normal(key, (N, L, H), dtype=jnp.float32)

    pooled = average_pool(hidden_states)
    pooled = jax.block_until_ready(pooled)

    ref = _reference(hidden_states)
    assert pooled.shape == (N, 1, H)
    assert jnp.allclose(pooled, ref, atol=1e-5, rtol=1e-5)

    print("KERNEL_OK")
</pallas_src>

<mosaic_0001>
module attributes {stable_mosaic.version = 11 : i64} {
  func.func @_avg_pool_kernel(%arg0: i32, %arg1: i32, %arg2: memref<1x128x768xf32, #tpu.memory_space<vmem>>, %arg3: memref<1x1x768xf32, #tpu.memory_space<vmem>>) attributes {dimension_semantics = [#tpu.dimension_semantics<parallel>, #tpu.dimension_semantics<arbitrary>], iteration_bounds = array<i64: 2, 1>, scalar_prefetch = 0 : i64, scratch_operands = 0 : i64, tpu.core_type = #tpu.core_type<tc>, window_params = [{transform_indices = @transform_0, window_bounds = array<i64: 1, 128, 768>}, {transform_indices = @transform_1, window_bounds = array<i64: 1, 1, 768>}]} {
    %c0_i32 = arith.constant 0 : i32
    %0 = arith.cmpi eq, %arg1, %c0_i32 : i32
    %1 = arith.extui %0 : i1 to i32
    %c0_i32_0 = arith.constant 0 : i32
    %2 = arith.cmpi ne, %1, %c0_i32_0 : i32
    scf.if %2 {
      %cst_11 = arith.constant 0.000000e+00 : f32
      %16 = vector.broadcast %cst_11 : f32 to vector<1x1x768xf32>
      %c0_12 = arith.constant 0 : index
      %c0_13 = arith.constant 0 : index
      %c0_14 = arith.constant 0 : index
      %17 = vector.load %arg3[%c0_12, %c0_13, %c0_14] : memref<1x1x768xf32, #tpu.memory_space<vmem>>, vector<1x1x768xf32>
      tpu.vector_store %arg3[%c0_12, %c0_13, %c0_14], %16 {strides = array<i32>} : memref<1x1x768xf32, #tpu.memory_space<vmem>>, vector<1x1x768xf32>,
    } else {
    }
    %c0 = arith.constant 0 : index
    %c0_1 = arith.constant 0 : index
    %c0_2 = arith.constant 0 : index
    %3 = vector.load %arg2[%c0, %c0_1, %c0_2] : memref<1x128x768xf32, #tpu.memory_space<vmem>>, vector<1x128x768xf32>
    %4 = vector.shape_cast %3 : vector<1x128x768xf32> to vector<128x768xf32>
    %c0_3 = arith.constant 0 : index
    %c0_4 = arith.constant 0 : index
    %c0_5 = arith.constant 0 : index
    %5 = vector.load %arg3[%c0_3, %c0_4, %c0_5] : memref<1x1x768xf32, #tpu.memory_space<vmem>>, vector<1x1x768xf32>
    %6 = vector.shape_cast %5 : vector<1x1x768xf32> to vector<1x768xf32>
    %cst = arith.constant dense<0.000000e+00> : vector<768xf32>
    %7 = vector.multi_reduction <add>, %4, %cst [0] : vector<128x768xf32> to vector<768xf32>
    %8 = vector.shape_cast %7 : vector<768xf32> to vector<1x768xf32>
    %9 = arith.addf %6, %8 : vector<1x768xf32>
    %c0_6 = arith.constant 0 : index
    %c0_7 = arith.constant 0 : index
    %c0_8 = arith.constant 0 : index
    %10 = vector.load %arg3[%c0_6, %c0_7, %c0_8] : memref<1x1x768xf32, #tpu.memory_space<vmem>>, vector<1x1x768xf32>
    %11 = vector.shape_cast %10 : vector<1x1x768xf32> to vector<1x768xf32>
    %12 = vector.shape_cast %9 : vector<1x768xf32> to vector<1x1x768xf32>
    tpu.vector_store %arg3[%c0_6, %c0_7, %c0_8], %12 {strides = array<i32>} : memref<1x1x768xf32, #tpu.memory_space<vmem>>, vector<1x1x768xf32>,
    %c0_i32_9 = arith.constant 0 : i32
    %13 = arith.cmpi eq, %arg1, %c0_i32_9 : i32
    %14 = arith.extui %13 : i1 to i32
    %c0_i32_10 = arith.constant 0 : i32
    %15 = arith.cmpi ne, %14, %c0_i32_10 : i32
    scf.if %15 {
      %c0_11 = arith.constant 0 : index
      %c0_12 = arith.constant 0 : index
      %c0_13 = arith.constant 0 : index
      %16 = vector.load %arg3[%c0_11, %c0_12, %c0_13] : memref<1x1x768xf32, #tpu.memory_space<vmem>>, vector<1x1x768xf32>
      %cst_14 = arith.constant 7.812500e-03 : f32
      %17 = vector.broadcast %cst_14 : f32 to vector<1x1x768xf32>
      %18 = arith.mulf %16, %17 : vector<1x1x768xf32>
      %c0_15 = arith.constant 0 : index
      %c0_16 = arith.constant 0 : index
      %c0_17 = arith.constant 0 : index
      %19 = vector.load %arg3[%c0_15, %c0_16, %c0_17] : memref<1x1x768xf32, #tpu.memory_space<vmem>>, vector<1x1x768xf32>
      tpu.vector_store %arg3[%c0_15, %c0_16, %c0_17], %18 {strides = array<i32>} : memref<1x1x768xf32, #tpu.memory_space<vmem>>, vector<1x1x768xf32>,
    } else {
    }
    return
  }
  func.func @transform_0(%arg0: i32, %arg1: i32) -> (i32, i32, i32) {
    %c0_i32 = arith.constant 0 : i32
    %c0_i32_0 = arith.constant 0 : i32
    return %arg0, %arg1, %c0_i32 : i32, i32, i32
  }
  func.func @transform_1(%arg0: i32, %arg1: i32) -> (i32, i32, i32) {
    %c0_i32 = arith.constant 0 : i32
    %c0_i32_0 = arith.constant 0 : i32
    %c0_i32_1 = arith.constant 0 : i32
    return %arg0, %c0_i32, %c0_i32_0 : i32, i32, i32
  }
}

</mosaic_0001>

<llo_original>
// kernel: tpu_custom_call.1
$region0: #{tpu_custom_call.1}
  #allocation0 [shape = 'u32[]', space=smem, size = 0x4, offset = 0x4, fixed_abs, tag = 'smem constant byte address 0x4 - core index']
  #allocation1 [shape = 'u32[144,128]{1,0:T(1,128)}', space=vmem, size = 0x12000, scoped, tag = 'internal scratch']
  %s0 = inlined_call_operand.hbm [shape: f32[2,128,768], index: 0, kind: input, shape index: {}]
  %s1 = inlined_call_operand.hbm [shape: f32[2,1,768], index: 1, kind: output, shape index: {}]
  %s2 = sld [smem:[#allocation0]]
  $region49: #{tpu_custom_call.1} parent=0
    _
  %s4 = ssub.s32 1, %s2
  %s5 = scalar_select 0, %s4, %s2
  $region1: #{tpu_custom_call.1} parent=0
    #allocation2 [shape = 'u8[786432]{0}', space=vmem, size = 0xc0000, scoped, tag = 'input window, operand 0']
    #allocation3 [shape = 's32[2]{0}', space=sflag, size = 0x8, scoped, tag = 'scoped memory for tpu_custom_call.1']
    #allocation4 [shape = 's32[2]{0}', space=sflag, size = 0x8, scoped, tag = 'scoped memory for tpu_custom_call.1']
    #allocation5 [shape = 'u8[6144]{0}', space=vmem, size = 0x1800, scoped, tag = 'output window, operand 0']
    %6 = vsyncpa [#allocation3], 0
    %s7 = scalar_lea.sflag [#allocation3], 1
    %8 = vsyncpa %s7, 0
    %9 = vsyncpa [#allocation4], 0
    %s10 = scalar_lea.sflag [#allocation4], 1
    %11 = vsyncpa %s10, 0
    loop: start=0, step=1, limit=4
    $region2: #{tpu_custom_call.1} parent=1 // loop_pre_header
      _
    $region3: #{tpu_custom_call.1} parent=1 // loop_header
      %s13 = sphi 0, %s17
      %p14 = scmp.ge.s32.totalorder %s13, 4
      %s20 = sphi 0, %s32
      %s21 = sphi 0, %s28
      %s22 = sphi 0, %s20
      %s23 = sphi 0, %s21
      %s24 = sphi 0, %s22
      %s25 = sphi 0, %s23
      %s37 = sphi 0, %s39
      %s40 = sphi 0, %s37
      %s41 = sphi 0, %s40
      %s57 = sphi 0, %s41
      %s63 = sphi 0, %s65
      %s66 = sphi 0, %s63
      %s67 = sphi 0, %s66
      %s83 = sphi 0, %s67
    $region4: #{tpu_custom_call.1} parent=1 // loop_header_branch
      %16 = sbr.rel (%p14) target = $region8
    $region5: #{tpu_custom_call.1} parent=1 // loop_body
      %s18 = ssub.s32 %s13, 1
      %s19 = ssub.s32 %s13, 2
      %s26 = sadd.s32 1, %s21
      %p27 = scmp.ge.s32.totalorder %s26, 1
      %s28 = scalar_select %p27, 0, %s26
      %s29 = sadd.s32 1, %s20
      %s30 = scalar_select %p27, %s29, %s20
      %p31 = scmp.ge.s32.totalorder %s30, 2
      %s32 = scalar_select %p31, 0, %s30
      %s33 = ssub.s32 %s20, %s32
      %s34 = ssub.s32 %s21, %s28
      %s35 = sor.u32 %s33, %s34
      %p36 = scmp.eq.s32.totalorder %s35, 0
      %s38 = sadd.s32 %s37, 1
      %s39 = scalar_select %p36, %s37, %s38
      %p42 = pneg %p36
      %p43 = scmp.eq.s32.totalorder %s13, 1
      %p44 = por %p42, %p43
      %p45 = scmp.ne.s32.totalorder %s37, %s40
      %p46 = scmp.eq.s32.totalorder %s13, 0
      %p47 = por %p45, %p46
      %p48 = scmp.ne.s32.totalorder %s37, %s40
      %p49 = scmp.eq.s32.totalorder %s18, 1
      %p50 = por %p48, %p49
      %p51 = scmp.ne.s32.totalorder %s40, %s41
      %p52 = scmp.eq.s32.totalorder %s18, 0
      %p53 = por %p51, %p52
      %p54 = scmp.ne.s32.totalorder %s40, %s41
      %p55 = scmp.eq.s32.totalorder %s19, 1
      %p56 = por %p54, %p55
      %p58 = scmp.ne.s32.totalorder %s41, %s57
      %p59 = scmp.eq.s32.totalorder %s19, 0
      %p60 = por %p58, %p59
      %s61 = ssub.s32 %s20, %s32
      %p62 = scmp.eq.s32.totalorder %s61, 0
      %s64 = sadd.s32 %s63, 1
      %s65 = scalar_select %p62, %s63, %s64
      %p68 = pneg %p62
      %p69 = scmp.eq.s32.totalorder %s13, 1
      %p70 = por %p68, %p69
      %p71 = scmp.ne.s32.totalorder %s63, %s66
      %p72 = scmp.eq.s32.totalorder %s13, 0
      %p73 = por %p71, %p72
      %p74 = scmp.ne.s32.totalorder %s63, %s66
      %p75 = scmp.eq.s32.totalorder %s18, 1
      %p76 = por %p74, %p75
      %p77 = scmp.ne.s32.totalorder %s66, %s67
      %p78 = scmp.eq.s32.totalorder %s18, 0
      %p79 = por %p77, %p78
      %p80 = scmp.ne.s32.totalorder %s66, %s67
      %p81 = scmp.eq.s32.totalorder %s19, 1
      %p82 = por %p80, %p81
      %p84 = scmp.ne.s32.totalorder %s67, %s83
      %p85 = scmp.eq.s32.totalorder %s19, 0
      %p86 = por %p84, %p85
      %p87 = scmp.le.s32.totalorder 1, %s13
      %p88 = scmp.lt.s32.totalorder %s13, 3
      %p89 = pnand %p87, %p88
      %p90 = pneg %p89
      // Predicated region
      $region9: #{tpu_custom_call.1} parent=5 // pred_check
        _
      $region10: #{tpu_custom_call.1} parent=5 // pred_check_branch
        %92 = sbr.rel (%p89) target = $region12
      $region11: #{tpu_custom_call.1} parent=5 // pred_region
        %s93 = ssub.s32 %s13, 1
      $region12: #{tpu_custom_call.1} parent=5 // pred_fallthru
        _
      %p94 = scmp.lt.s32.totalorder %s13, 2
      // Predicated region
      $region13: #{tpu_custom_call.1} parent=5 // pred_check
        %p95 = pneg %p94
      $region14: #{tpu_custom_call.1} parent=5 // pred_check_branch
        %97 = sbr.rel (%p95) target = $region16
      $region15: #{tpu_custom_call.1} parent=5 // pred_region
        // Predicated region
        $region17: #{tpu_custom_call.1} parent=15 // pred_check
          %p98 = pneg %p47
        $region18: #{tpu_custom_call.1} parent=15 // pred_check_branch
          %100 = sbr.rel (%p98) target = $region20
        $region19: #{tpu_custom_call.1} parent=15 // pred_region
          %s101 = sand.u32 %s37, 1
          %s102 = scalar_lea.sflag [#allocation3], %s101
          %s103 = sand.u32 %s37, 1
          %s104 = smul.addr %s103, 768
          %s105 = scalar_lea.vmem [#allocation2], %s104
          %s106 = smul.u32 16, %s21
          %s108 = ssub.s32 12288, 12288
          %109 = vsyncadd %s102, %s108
          %s110 = smul.addr %s106, 6
          %s111 = smul.addr %s20, 96
          %s112 = sadd.s32 %s110, %s111
          %s113 = smul.addr %s112, 128
          %s114 = scalar_lea.hbm %s0, %s113
          %s115 = sshll.u32 %s105, 4
          %s116 = int_to_ptr.vmem [resolvable:$true] %s115
          %121 = dma.hbm_to_vmem [thread:$0]  %s114, 12288, %s116, %s102, 768, 768, 48
        $region20: #{tpu_custom_call.1} parent=15 // pred_fallthru
          _
      $region16: #{tpu_custom_call.1} parent=5 // pred_fallthru
        _
      %p122 = scmp.le.s32.totalorder 1, %s13
      %p123 = scmp.lt.s32.totalorder %s13, 3
      %p124 = pnand %p122, %p123
      %p125 = pneg %p124
      // Predicated region
      $region21: #{tpu_custom_call.1} parent=5 // pred_check
        _
      $region22: #{tpu_custom_call.1} parent=5 // pred_check_branch
        %127 = sbr.rel (%p124) target = $region24
      $region23: #{tpu_custom_call.1} parent=5 // pred_region
        %s128 = ssub.s32 %s13, 1
        %s129 = sand.u32 %s40, 1
        %s130 = scalar_lea.sflag [#allocation3], %s129
        %s131 = sand.u32 %s40, 1
        %s132 = smul.addr %s131, 768
        %s133 = scalar_lea.vmem [#allocation2], %s132
        // Predicated region
        $region25: #{tpu_custom_call.1} parent=23 // pred_check
          %p134 = pneg %p53
        $region26: #{tpu_custom_call.1} parent=23 // pred_check_branch
          %136 = sbr.rel (%p134) target = $region28
        $region27: #{tpu_custom_call.1} parent=23 // pred_region
          %137 = dma.done %s130, 12288
        $region28: #{tpu_custom_call.1} parent=23 // pred_fallthru
          _
        %s138 = sand.u32 %s40, 1
        %s139 = scalar_lea.sflag [#allocation3], %s138
        %s140 = sand.u32 %s40, 1
        %s141 = smul.addr %s140, 768
        %s142 = scalar_lea.vmem [#allocation2], %s141
        %p143 = pneg %p53
        %p144 = pneg %p50
        %p145 = pneg %p79
        %p146 = pneg %p76
        %s147 = sand.u32 %s66, 1
        %s148 = scalar_lea.sflag [#allocation4], %s147
        %s149 = sand.u32 %s66, 1
        %s150 = smul.addr %s149, 6
        %s151 = scalar_lea.vmem [#allocation5], %s150
        %s152 = smul.u32 16, %s23
        %p153 = scmp.eq.s32.totalorder %s23, 0
        // Predicated region
        $region29: #{tpu_custom_call.1} parent=23 // pred_check
          %p154 = pneg %p153
        $region30: #{tpu_custom_call.1} parent=23 // pred_check_branch
          %156 = sbr.rel (%p154) target = $region32
        $region31: #{tpu_custom_call.1} parent=23 // pred_region
          %v157 = vlaneseq
          %vm158 = vcmp.ge.s32.totalorder %v157, 0
          %vm159 = vcmp.lt.s32.totalorder %v157, 768
          %vm160 = vmand %vm158, %vm159
          %161 = vst.msk [vmem:[%s151] sm:$0x3f] %vm160, 0.0
        $region32: #{tpu_custom_call.1} parent=23 // pred_fallthru
          _
        %v162 = vld [vmem:[%s133] sm:$0xff]
        %v163 = vld [vmem:[%s133 + $0x8] sm:$0xff]
        %v164 = vld [vmem:[%s133 + $0x10] sm:$0xff]
        %v165 = vld [vmem:[%s133 + $0x18] sm:$0xff]
        %v166 = vld [vmem:[%s133 + $0x20] sm:$0xff]
        %v167 = vld [vmem:[%s133 + $0x28] sm:$0xff]
        %v168 = vld [vmem:[%s133 + $0x30] sm:$0xff]
        %v169 = vld [vmem:[%s133 + $0x38] sm:$0xff]
        %v170 = vld [vmem:[%s133 + $0x40] sm:$0xff]
        %v171 = vld [vmem:[%s133 + $0x48] sm:$0xff]
        %v172 = vld [vmem:[%s133 + $0x50] sm:$0xff]
        %v173 = vld [vmem:[%s133 + $0x58] sm:$0xff]
        %v174 = vld [vmem:[%s133 + $0x60] sm:$0xff]
        %v175 = vld [vmem:[%s133 + $0x68] sm:$0xff]
        %v176 = vld [vmem:[%s133 + $0x70] sm:$0xff]
        %v177 = vld [vmem:[%s133 + $0x78] sm:$0xff]
        %v178 = vld [vmem:[%s133 + $0x80] sm:$0xff]
        %v179 = vld [vmem:[%s133 + $0x88] sm:$0xff]
        %v180 = vld [vmem:[%s133 + $0x90] sm:$0xff]
        %v181 = vld [vmem:[%s133 + $0x98] sm:$0xff]
        %v182 = vld [vmem:[%s133 + $0xa0] sm:$0xff]
        %v183 = vld [vmem:[%s133 + $0xa8] sm:$0xff]
        %v184 = vld [vmem:[%s133 + $0xb0] sm:$0xff]
        %v185 = vld [vmem:[%s133 + $0xb8] sm:$0xff]
        %v186 = vld [vmem:[%s133 + $0xc0] sm:$0xff]
        %v187 = vld [vmem:[%s133 + $0xc8] sm:$0xff]
        %v188 = vld [vmem:[%s133 + $0xd0] sm:$0xff]
        %v189 = vld [vmem:[%s133 + $0xd8] sm:$0xff]
        %v190 = vld [vmem:[%s133 + $0xe0] sm:$0xff]
        %v191 = vld [vmem:[%s133 + $0xe8] sm:$0xff]
        %v192 = vld [vmem:[%s133 + $0xf0] sm:$0xff]
        %v193 = vld [vmem:[%s133 + $0xf8] sm:$0xff]
        %v194 = vld [vmem:[%s133 + $0x100] sm:$0xff]
        %v195 = vld [vmem:[%s133 + $0x108] sm:$0xff]
        %v196 = vld [vmem:[%s133 + $0x110] sm:$0xff]
        %v197 = vld [vmem:[%s133 + $0x118] sm:$0xff]
        %v198 = vld [vmem:[%s133 + $0x120] sm:$0xff]
        %v199 = vld [vmem:[%s133 + $0x128] sm:$0xff]
        %v200 = vld [vmem:[%s133 + $0x130] sm:$0xff]
        %v201 = vld [vmem:[%s133 + $0x138] sm:$0xff]
        %v202 = vld [vmem:[%s133 + $0x140] sm:$0xff]
        %v203 = vld [vmem:[%s133 + $0x148] sm:$0xff]
        %v204 = vld [vmem:[%s133 + $0x150] sm:$0xff]
        %v205 = vld [vmem:[%s133 + $0x158] sm:$0xff]
        %v206 = vld [vmem:[%s133 + $0x160] sm:$0xff]
        %v207 = vld [vmem:[%s133 + $0x168] sm:$0xff]
        %v208 = vld [vmem:[%s133 + $0x170] sm:$0xff]
        %v209 = vld [vmem:[%s133 + $0x178] sm:$0xff]
        %v210 = vld [vmem:[%s133 + $0x180] sm:$0xff]
        %v211 = vld [vmem:[%s133 + $0x188] sm:$0xff]
        %v212 = vld [vmem:[%s133 + $0x190] sm:$0xff]
        %v213 = vld [vmem:[%s133 + $0x198] sm:$0xff]
        %v214 = vld [vmem:[%s133 + $0x1a0] sm:$0xff]
        %v215 = vld [vmem:[%s133 + $0x1a8] sm:$0xff]
        %v216 = vld [vmem:[%s133 + $0x1b0] sm:$0xff]
        %v217 = vld [vmem:[%s133 + $0x1b8] sm:$0xff]
        %v218 = vld [vmem:[%s133 + $0x1c0] sm:$0xff]
        %v219 = vld [vmem:[%s133 + $0x1c8] sm:$0xff]
        %v220 = vld [vmem:[%s133 + $0x1d0] sm:$0xff]
        %v221 = vld [vmem:[%s133 + $0x1d8] sm:$0xff]
        %v222 = vld [vmem:[%s133 + $0x1e0] sm:$0xff]
        %v223 = vld [vmem:[%s133 + $0x1e8] sm:$0xff]
        %v224 = vld [vmem:[%s133 + $0x1f0] sm:$0xff]
        %v225 = vld [vmem:[%s133 + $0x1f8] sm:$0xff]
        %v226 = vld [vmem:[%s133 + $0x200] sm:$0xff]
        %v227 = vld [vmem:[%s133 + $0x208] sm:$0xff]
        %v228 = vld [vmem:[%s133 + $0x210] sm:$0xff]
        %v229 = vld [vmem:[%s133 + $0x218] sm:$0xff]
        %v230 = vld [vmem:[%s133 + $0x220] sm:$0xff]
        %v231 = vld [vmem:[%s133 + $0x228] sm:$0xff]
        %v232 = vld [vmem:[%s133 + $0x230] sm:$0xff]
        %v233 = vld [vmem:[%s133 + $0x238] sm:$0xff]
        %v234 = vld [vmem:[%s133 + $0x240] sm:$0xff]
        %v235 = vld [vmem:[%s133 + $0x248] sm:$0xff]
        %v236 = vld [vmem:[%s133 + $0x250] sm:$0xff]
        %v237 = vld [vmem:[%s133 + $0x258] sm:$0xff]
        %v238 = vld [vmem:[%s133 + $0x260] sm:$0xff]
        %v239 = vld [vmem:[%s133 + $0x268] sm:$0xff]
        %v240 = vld [vmem:[%s133 + $0x270] sm:$0xff]
        %v241 = vld [vmem:[%s133 + $0x278] sm:$0xff]
        %v242 = vld [vmem:[%s133 + $0x280] sm:$0xff]
        %v243 = vld [vmem:[%s133 + $0x288] sm:$0xff]
        %v244 = vld [vmem:[%s133 + $0x290] sm:$0xff]
        %v245 = vld [vmem:[%s133 + $0x298] sm:$0xff]
        %v246 = vld [vmem:[%s133 + $0x2a0] sm:$0xff]
        %v247 = vld [vmem:[%s133 + $0x2a8] sm:$0xff]
        %v248 = vld [vmem:[%s133 + $0x2b0] sm:$0xff]
        %v249 = vld [vmem:[%s133 + $0x2b8] sm:$0xff]
        %v250 = vld [vmem:[%s133 + $0x2c0] sm:$0xff]
        %v251 = vld [vmem:[%s133 + $0x2c8] sm:$0xff]
        %v252 = vld [vmem:[%s133 + $0x2d0] sm:$0xff]
        %v253 = vld [vmem:[%s133 + $0x2d8] sm:$0xff]
        %v254 = vld [vmem:[%s133 + $0x2e0] sm:$0xff]
        %v255 = vld [vmem:[%s133 + $0x2e8] sm:$0xff]
        %v256 = vld [vmem:[%s133 + $0x2f0] sm:$0xff]
        %v257 = vld [vmem:[%s133 + $0x2f8] sm:$0xff]
        %v258 = vld [vmem:[%s151] sm:$0x3f]
        %v259 = vadd.f32 %v162, %v168
        %v260 = vadd.f32 %v259, %v174
        %v261 = vadd.f32 %v260, %v180
        %v262 = vadd.f32 %v261, %v186
        %v263 = vadd.f32 %v262, %v192
        %v264 = vadd.f32 %v263, %v198
        %v265 = vadd.f32 %v264, %v204
        %v266 = vadd.f32 %v265, %v210
        %v267 = vadd.f32 %v266, %v216
        %v268 = vadd.f32 %v267, %v222
        %v269 = vadd.f32 %v268, %v228
        %v270 = vadd.f32 %v269, %v234
        %v271 = vadd.f32 %v270, %v240
        %v272 = vadd.f32 %v271, %v246
        %v273 = vadd.f32 %v272, %v252
        %v274 = vrot.slane %v273, 4
        %v275 = vadd.f32 %v273, %v274
        %v276 = vrot.slane %v275, 2
        %v277 = vadd.f32 %v275, %v276
        %v278 = vrot.slane %v277, 1
        %v279 = vadd.f32 %v277, %v278
        %v280 = vadd.f32 %v163, %v169
        %v281 = vadd.f32 %v280, %v175
        %v282 = vadd.f32 %v281, %v181
        %v283 = vadd.f32 %v282, %v187
        %v284 = vadd.f32 %v283, %v193
        %v285 = vadd.f32 %v284, %v199
        %v286 = vadd.f32 %v285, %v205
        %v287 = vadd.f32 %v286, %v211
        %v288 = vadd.f32 %v287, %v217
        %v289 = vadd.f32 %v288, %v223
        %v290 = vadd.f32 %v289, %v229
        %v291 = vadd.f32 %v290, %v235
        %v292 = vadd.f32 %v291, %v241
        %v293 = vadd.f32 %v292, %v247
        %v294 = vadd.f32 %v293, %v253
        %v295 = vrot.slane %v294, 4
        %v296 = vadd.f32 %v294, %v295
        %v297 = vrot.slane %v296, 2
        %v298 = vadd.f32 %v296, %v297
        %v299 = vrot.slane %v298, 1
        %v300 = vadd.f32 %v298, %v299
        %v301 = vadd.f32 %v164, %v170
        %v302 = vadd.f32 %v301, %v176
        %v303 = vadd.f32 %v302, %v182
        %v304 = vadd.f32 %v303, %v188
        %v305 = vadd.f32 %v304, %v194
        %v306 = vadd.f32 %v305, %v200
        %v307 = vadd.f32 %v306, %v206
        %v308 = vadd.f32 %v307, %v212
        %v309 = vadd.f32 %v308, %v218
        %v310 = vadd.f32 %v309, %v224
        %v311 = vadd.f32 %v310, %v230
        %v312 = vadd.f32 %v311, %v236
        %v313 = vadd.f32 %v312, %v242
        %v314 = vadd.f32 %v313, %v248
        %v315 = vadd.f32 %v314, %v254
        %v316 = vrot.slane %v315, 4
        %v317 = vadd.f32 %v315, %v316
        %v318 = vrot.slane %v317, 2
        %v319 = vadd.f32 %v317, %v318
        %v320 = vrot.slane %v319, 1
        %v321 = vadd.f32 %v319, %v320
        %v322 = vadd.f32 %v165, %v171
        %v323 = vadd.f32 %v322, %v177
        %v324 = vadd.f32 %v323, %v183
        %v325 = vadd.f32 %v324, %v189
        %v326 = vadd.f32 %v325, %v195
        %v327 = vadd.f32 %v326, %v201
        %v328 = vadd.f32 %v327, %v207
        %v329 = vadd.f32 %v328, %v213
        %v330 = vadd.f32 %v329, %v219
        %v331 = vadd.f32 %v330, %v225
        %v332 = vadd.f32 %v331, %v231
        %v333 = vadd.f32 %v332, %v237
        %v334 = vadd.f32 %v333, %v243
        %v335 = vadd.f32 %v334, %v249
        %v336 = vadd.f32 %v335, %v255
        %v337 = vrot.slane %v336, 4
        %v338 = vadd.f32 %v336, %v337
        %v339 = vrot.slane %v338, 2
        %v340 = vadd.f32 %v338, %v339
        %v341 = vrot.slane %v340, 1
        %v342 = vadd.f32 %v340, %v341
        %v343 = vadd.f32 %v166, %v172
        %v344 = vadd.f32 %v343, %v178
        %v345 = vadd.f32 %v344, %v184
        %v346 = vadd.f32 %v345, %v190
        %v347 = vadd.f32 %v346, %v196
        %v348 = vadd.f32 %v347, %v202
        %v349 = vadd.f32 %v348, %v208
        %v350 = vadd.f32 %v349, %v214
        %v351 = vadd.f32 %v350, %v220
        %v352 = vadd.f32 %v351, %v226
        %v353 = vadd.f32 %v352, %v232
        %v354 = vadd.f32 %v353, %v238
        %v355 = vadd.f32 %v354, %v244
        %v356 = vadd.f32 %v355, %v250
        %v357 = vadd.f32 %v356, %v256
        %v358 = vrot.slane %v357, 4
        %v359 = vadd.f32 %v357, %v358
        %v360 = vrot.slane %v359, 2
        %v361 = vadd.f32 %v359, %v360
        %v362 = vrot.slane %v361, 1
        %v363 = vadd.f32 %v361, %v362
        %v364 = vadd.f32 %v167, %v173
        %v365 = vadd.f32 %v364, %v179
        %v366 = vadd.f32 %v365, %v185
        %v367 = vadd.f32 %v366, %v191
        %v368 = vadd.f32 %v367, %v197
        %v369 = vadd.f32 %v368, %v203
        %v370 = vadd.f32 %v369, %v209
        %v371 = vadd.f32 %v370, %v215
        %v372 = vadd.f32 %v371, %v221
        %v373 = vadd.f32 %v372, %v227
        %v374 = vadd.f32 %v373, %v233
        %v375 = vadd.f32 %v374, %v239
        %v376 = vadd.f32 %v375, %v245
        %v377 = vadd.f32 %v376, %v251
        %v378 = vadd.f32 %v377, %v257
        %v379 = vrot.slane %v378, 4
        %v380 = vadd.f32 %v378, %v379
        %v381 = vrot.slane %v380, 2
        %v382 = vadd.f32 %v380, %v381
        %v383 = vrot.slane %v382, 1
        %v384 = vadd.f32 %v382, %v383
        %v391 = vcombine.low %v279, %v300
        %v392 = vcombine.low %v321, %v342
        %v393 = vcombine.low %v363, %v384
        %v395 = vunpack.c.l.s4 1966171168
        %v396 = vunpack.c.0.s8 %v395
        %v397 = vlaneseq
        %v398 = vshrl.u32 %v397, 7
        %v399 = vsub.s32 %v396, %v398
        %v400 = vrot.slane %v391, %v399
        %v402 = vunpack.c.l.s4 1966171168
        %v403 = vunpack.c.0.s8 %v402
        %v404 = vlaneseq
        %v405 = vshrl.u32 %v404, 7
        %v406 = vsub.s32 %v403, %v405
        %v407 = vrot.slane %v392, %v406
        %v409 = vunpack.c.l.s4 1966171168
        %v410 = vunpack.c.0.s8 %v409
        %v411 = vlaneseq
        %v412 = vshrl.u32 %v411, 7
        %v413 = vsub.s32 %v410, %v412
        %v414 = vrot.slane %v393, %v413
        %v415 = vcombine.low %v400, %v407
        %v417 = vunpack.c.l.s4 1966171168
        %v418 = vunpack.c.0.s8 %v417
        %v419 = vlaneseq
        %v420 = vshrl.u32 %v419, 7
        %v421 = vsub.s32 %v418, %v420
        %v422 = vrot.slane %v415, %v421
        %v424 = vunpack.c.l.s4 1966171168
        %v425 = vunpack.c.0.s8 %v424
        %v426 = vlaneseq
        %v427 = vshrl.u32 %v426, 7
        %v428 = vsub.s32 %v425, %v427
        %v429 = vrot.slane %v414, %v428
        %v430 = vcombine.low %v422, %v429
        %v432 = vadd.f32 %v258, %v430
        %v433 = vlaneseq
        %vm434 = vcmp.ge.s32.totalorder %v433, 0
        %vm435 = vcmp.lt.s32.totalorder %v433, 768
        %vm436 = vmand %vm434, %vm435
        %437 = vst.msk [vmem:[%s151] sm:$0x3f] %vm436, %v432
        // Predicated region
        $region33: #{tpu_custom_call.1} parent=23 // pred_check
          %p438 = pneg %p153
        $region34: #{tpu_custom_call.1} parent=23 // pred_check_branch
          %440 = sbr.rel (%p438) target = $region36
        $region35: #{tpu_custom_call.1} parent=23 // pred_region
          %v441 = vld [vmem:[%s151] sm:$0x3f]
          %v442 = vmul.f32 %v441, 0.0078125
          %443 = vst.msk [vmem:[%s151] sm:$0x3f] %vm436, %v442
        $region36: #{tpu_custom_call.1} parent=23 // pred_fallthru
          _
        %s444 = sand.u32 %s66, 1
        %s445 = scalar_lea.sflag [#allocation4], %s444
        %s446 = sand.u32 %s66, 1
        %s447 = smul.addr %s446, 6
        %s448 = scalar_lea.vmem [#allocation5], %s447
        // Predicated region
        $region37: #{tpu_custom_call.1} parent=23 // pred_check
          %p449 = pneg %p76
        $region38: #{tpu_custom_call.1} parent=23 // pred_check_branch
          %451 = sbr.rel (%p449) target = $region40
        $region39: #{tpu_custom_call.1} parent=23 // pred_region
          %s453 = ssub.s32 96, 96
          %454 = vsyncadd %s445, %s453
          %s455 = smul.addr %s22, 6
          %s456 = smul.addr %s455, 16
          %s457 = scalar_lea.hbm %s1, %s456
          %s459 = sshll.u32 %s448, 4
          %s460 = int_to_ptr.vmem [resolvable:$true] %s459
          %462 = dma.vmem_to_hbm [thread:$0]  %s460, 96, %s457, %s445
        $region40: #{tpu_custom_call.1} parent=23 // pred_fallthru
          _
      $region24: #{tpu_custom_call.1} parent=5 // pred_fallthru
        _
      %p463 = scmp.le.s32.totalorder 2, %s13
      // Predicated region
      $region41: #{tpu_custom_call.1} parent=5 // pred_check
        %p464 = pneg %p463
      $region42: #{tpu_custom_call.1} parent=5 // pred_check_branch
        %466 = sbr.rel (%p464) target = $region44
      $region43: #{tpu_custom_call.1} parent=5 // pred_region
        %s467 = ssub.s32 %s13, 2
        // Predicated region
        $region45: #{tpu_custom_call.1} parent=43 // pred_check
          %p468 = pneg %p82
        $region46: #{tpu_custom_call.1} parent=43 // pred_check_branch
          %470 = sbr.rel (%p468) target = $region48
        $region47: #{tpu_custom_call.1} parent=43 // pred_region
          %s471 = sand.u32 %s67, 1
          %s472 = scalar_lea.sflag [#allocation4], %s471
          %s473 = sand.u32 %s67, 1
          %s474 = smul.addr %s473, 6
          %s475 = scalar_lea.vmem [#allocation5], %s474
          %476 = dma.done %s472, 96
        $region48: #{tpu_custom_call.1} parent=43 // pred_fallthru
          _
      $region44: #{tpu_custom_call.1} parent=5 // pred_fallthru
        _
    $region6: #{tpu_custom_call.1} parent=1 // loop_footer
      %s17 = sadd.s32 1, %s13
    $region7: #{tpu_custom_call.1} parent=1 // loop_footer_branch
      %12 = sbr.rel target = $region3
    $region8: #{tpu_custom_call.1} parent=1 // loop_exit
      _
    %477 = vsyncpa [#allocation3], 1
    %s478 = scalar_lea.sflag [#allocation3], 1
    %479 = vsyncpa %s478, 1
    %480 = vsyncpa [#allocation4], 1
    %s481 = scalar_lea.sflag [#allocation4], 1
    %482 = vsyncpa %s481, 1

</llo_original>
